<compile_context>
chip_gen: v5e
topology: v5e:2x2
jax: 0.10.0
libtpu: 0.0.40
codegen_flags: <defaults>
</compile_context>

<pallas_src>
import functools
import math

import jax
import jax.numpy as jnp
from jax.experimental import pallas as pl
from jax.experimental.pallas import tpu as pltpu

SUB, LANE = 8, 128


# ----------------------------- helpers ---------------------------------------


def _round_up(x, m):
    return (x + m - 1) // m * m


def _softplus(x):
    # PyTorch nn.Softplus(beta=1, threshold=20): x where x > 20 else log1p(exp(x)).
    return jnp.where(x > 20.0, x, jnp.log1p(jnp.exp(jnp.minimum(x, 20.0))))


def _spec(shape, index_map, bufs=None):
    """BlockSpec with optional deeper pipelining; fall back if unsupported."""
    if bufs is None or bufs <= 2:
        return pl.BlockSpec(shape, index_map)
    try:
        return pl.BlockSpec(shape, index_map, pipeline_mode=pl.Buffered(bufs))
    except (TypeError, AttributeError):
        return pl.BlockSpec(shape, index_map)


# ----------------------------- kernel ---------------------------------------


def _mlp_kernel(x_ref,
                w1_ref, b1_ref,
                w2_ref, b2_ref,
                w3_ref, b3_ref,
                w4_ref, b4_ref,
                out_ref,
                acc_ref):
    k = pl.program_id(1)

    # Layer-1 accumulator: fold the bias into the init at k == 0.
    @pl.when(k == 0)
    def _():
        acc_ref[...] = jnp.broadcast_to(b1_ref[...], acc_ref.shape)

    # Streaming K-slab of the big first matmul.  x arrives f32 and is cast to
    # bf16 here (hidden under the DMA); w1 is pre-cast bf16; f32 accumulation.
    acc_ref[...] += jnp.dot(x_ref[...].astype(jnp.bfloat16), w1_ref[...],
                            preferred_element_type=jnp.float32)

    # Everything after layer 1 is tiny; run it fused on the last K step only.
    @pl.when(k == pl.num_programs(1) - 1)
    def _():
        h = _softplus(acc_ref[...])
        h = _softplus(jnp.dot(h, w2_ref[...],
                              preferred_element_type=jnp.float32) + b2_ref[...])
        h = _softplus(jnp.dot(h, w3_ref[...],
                              preferred_element_type=jnp.float32) + b3_ref[...])

        # classifier: Linear -> LogSoftmax(dim=1).  Padded classifier columns
        # carry bias -1e30; in f32 their exp() is exactly 0 in the LSE.
        logits = (jnp.dot(h, w4_ref[...],
                          preferred_element_type=jnp.float32) + b4_ref[...])
        m = jnp.max(logits, axis=-1, keepdims=True)
        lse = jnp.log(jnp.sum(jnp.exp(logits - m), axis=-1, keepdims=True)) + m
        out_ref[...] = (logits - lse).astype(out_ref.dtype)


# ----------------------------- builder / wrapper -----------------------------


def build_forward(params, num_classes, *, block_b=256, tk=6400):
    """One-time operand prep (hoisted out of the hot path) + a jitted forward.

    params: dict with w1..w4 of shape (in, out) f32 and b1..b4 of shape (1, out).
    Returns (jitted_forward, prepared_params); call as jitted_forward(x, prep).
    """
    w1, b1 = params["w1"], params["b1"]
    w2, b2 = params["w2"], params["b2"]
    w3, b3 = params["w3"], params["b3"]
    w4, b4 = params["w4"], params["b4"]
    F, H1 = w1.shape
    H2, H3 = w2.shape[1], w3.shape[1]
    C = num_classes
    assert w4.shape == (H3, C)

    # --- K tiling: pad F only to lane granularity, then split into n_k equal
    #     128-multiple slabs close to the target tk (padding waste < ~1%). ---
    F128 = _round_up(F, LANE)
    n_k = max(1, math.ceil(F128 / tk))
    tk_eff = _round_up(math.ceil(F128 / n_k), LANE)
    F_pad = n_k * tk_eff
    C_pad = _round_up(C, LANE)                       # lane-dense output slab

    # --- one-time operand prep (NOT in the per-call path) ---------------------
    w1_p = jnp.pad(w1, ((0, F_pad - F), (0, 0))).astype(jnp.bfloat16)
    w4_p = jnp.pad(w4, ((0, 0), (0, C_pad - C)))
    b4_p = jnp.pad(b4, ((0, 0), (0, C_pad - C)), constant_values=-1e30)
    prep = dict(w1=w1_p, b1=b1, w2=w2, b2=b2, w3=w3, b3=b3, w4=w4_p, b4=b4_p)

    # --- generation-specific knobs --------------------------------------------
    try:
        kind = jax.devices()[0].device_kind.lower()
    except Exception:  # pragma: no cover - e.g. interpret mode on CPU
        kind = ""
    is_v7 = "v7" in kind
    # v7x: 64 MiB physical VMEM -> keep scoped limit modest; v5e/v6e: 128 MiB.
    vmem_limit = (40 if is_v7 else 64) * 1024 * 1024

    def forward(x, p):
        B = x.shape[0]
        x2d = x.reshape(B, -1)                       # x.view(x.size(0), -1)
        assert x2d.shape[1] == F, "input feature size mismatch"

        # batch tiling (big tiles amortize w1 re-streaming)
        bb = _round_up(min(block_b, _round_up(B, SUB)), SUB)
        if is_v7 and B > SUB and _round_up(B, bb) // bb < 2:
            # guarantee >= 2 batch tiles so both v7x TensorCores get work
            bb = _round_up(math.ceil(B / 2), SUB)
        B_pad = _round_up(B, bb)
        n_b = B_pad // bb

        # pad x only when actually needed (zero padding is exact for the matmul)
        if (B_pad, F_pad) != (B, F):
            x2d = jnp.pad(x2d, ((0, B_pad - B), (0, F_pad - F)))

        def const_spec(shape):
            # whole-array block, replicated across the (batch, K) grid
            return pl.BlockSpec(shape, lambda b, k: (0,) * len(shape))

        cost = pl.CostEstimate(
            flops=2 * B_pad * (F_pad * H1 + H1 * H2 + H2 * H3 + H3 * C_pad),
            transcendentals=B_pad * (2 * (H1 + H2 + H3) + C_pad + 1),
            bytes_accessed=(B_pad * F_pad * 4              # x, f32, one pass
                            + n_b * F_pad * H1 * 2         # w1 bf16, re-read per batch tile
                            + 4 * (H1 * H2 + H2 * H3 + H3 * C_pad
                                   + H1 + H2 + H3 + C_pad)
                            + B_pad * C_pad * 4),
        )

        out = pl.pallas_call(
            _mlp_kernel,
            out_shape=jax.ShapeDtypeStruct((B_pad, C_pad), jnp.float32),
            grid_spec=pltpu.PrefetchScalarGridSpec(
                num_scalar_prefetch=0,
                grid=(n_b, n_k),
                in_specs=[
                    _spec((bb, tk_eff), lambda b, k: (b, k),
                          bufs=3 if n_b * n_k >= 3 else 2),      # x tile (f32)
                    _spec((tk_eff, H1), lambda b, k: (k, 0),
                          bufs=3 if n_k >= 3 else 2),            # w1 K-slab (bf16)
                    const_spec((1, H1)),                          # b1
                    const_spec((H1, H2)), const_spec((1, H2)),    # layer 2
                    const_spec((H2, H3)), const_spec((1, H3)),    # layer 3
                    const_spec((H3, C_pad)), const_spec((1, C_pad)),  # classifier
                ],
                out_specs=pl.BlockSpec((bb, C_pad), lambda b, k: (b, 0)),
                scratch_shapes=[pltpu.VMEM((bb, H1), jnp.float32)],  # layer-1 acc
            ),
            compiler_params=pltpu.CompilerParams(
                dimension_semantics=("parallel", "arbitrary"),
                vmem_limit_bytes=vmem_limit,
            ),
            cost_estimate=cost,
        )(x2d, p["w1"], p["b1"], p["w2"], p["b2"],
          p["w3"], p["b3"], p["w4"], p["b4"])

        return out[:B, :C]

    return jax.jit(forward), prep


# ----------------------------- param init ------------------------------------


def init_params(key, in_features, hidden_units, num_classes):
    """Init mirroring PyTorch nn.Linear default U[-1/sqrt(fan_in), 1/sqrt(fan_in)]."""
    dims = [in_features] + list(hidden_units) + [num_classes]
    params = {}
    for li, (fan_in, fan_out) in enumerate(zip(dims[:-1], dims[1:]), start=1):
        key, kw, kb = jax.random.split(key, 3)
        bound = 1.0 / (fan_in ** 0.5)
        params[f"w{li}"] = jax.random.uniform(kw, (fan_in, fan_out),
                                              jnp.float32, -bound, bound)
        params[f"b{li}"] = jax.random.uniform(kb, (1, fan_out),
                                              jnp.float32, -bound, bound)
    return params


# ----------------------------- reference (pure f32 JAX) -----------------------


def reference_forward(x, params):
    h = x.reshape(x.shape[0], -1)
    h = _softplus(h @ params["w1"] + params["b1"])
    h = _softplus(h @ params["w2"] + params["b2"])
    h = _softplus(h @ params["w3"] + params["b3"])
    logits = h @ params["w4"] + params["b4"]
    return jax.nn.log_softmax(logits, axis=1)


# ----------------------------- main -------------------------------------------


if __name__ == "__main__":
    # Small-shape demo structurally identical to the PyTorch module (the real
    # module uses Linear(64*795, 256); here the flattened input is 8*100=800,
    # hidden_units and forward structure are identical).
    B, C_IN, T_IN = 16, 8, 100
    HIDDEN = [256, 128, 64]
    NUM_CLASSES = 4

    key = jax.random.PRNGKey(0)
    key, kx, kp = jax.random.split(key, 3)
    x = jax.random.normal(kx, (B, C_IN, T_IN), jnp.float32)
    params = init_params(kp, C_IN * T_IN, HIDDEN, NUM_CLASSES)

    fwd, prep = build_forward(params, NUM_CLASSES, block_b=256, tk=6400)
    out = jax.block_until_ready(fwd(x, prep))

    # True f32 reference.  The kernel runs only layer 1 with bf16 inputs
    # (f32 accumulation); at these magnitudes (unit-variance x, 1/sqrt(fan_in)
    # weights) the resulting log-prob error is ~1e-2, so 3e-2 is a safe bound.
    ref = reference_forward(x, params)
    assert out.shape == (B, NUM_CLASSES)
    assert jnp.allclose(out, ref, atol=3e-2, rtol=3e-2), "mismatch vs f32 reference"
    # log-softmax rows must exp-sum to 1
    assert jnp.allclose(jnp.sum(jnp.exp(out), axis=1), 1.0, atol=1e-3)

    print("KERNEL_OK")
</pallas_src>

<mosaic_0001>
module attributes {stable_mosaic.version = 11 : i64} {
  func.func @_mlp_kernel(%arg0: i32, %arg1: i32, %arg2: memref<16x896xf32, #tpu.memory_space<vmem>>, %arg3: memref<896x256xbf16, #tpu.memory_space<vmem>>, %arg4: memref<1x256xf32, #tpu.memory_space<vmem>>, %arg5: memref<256x128xf32, #tpu.memory_space<vmem>>, %arg6: memref<1x128xf32, #tpu.memory_space<vmem>>, %arg7: memref<128x64xf32, #tpu.memory_space<vmem>>, %arg8: memref<1x64xf32, #tpu.memory_space<vmem>>, %arg9: memref<64x128xf32, #tpu.memory_space<vmem>>, %arg10: memref<1x128xf32, #tpu.memory_space<vmem>>, %arg11: memref<16x128xf32, #tpu.memory_space<vmem>>, %arg12: memref<16x256xf32, #tpu.memory_space<vmem>>) attributes {dimension_semantics = [#tpu.dimension_semantics<parallel>, #tpu.dimension_semantics<arbitrary>], iteration_bounds = array<i64: 1, 1>, scalar_prefetch = 0 : i64, scratch_operands = 1 : i64, tpu.core_type = #tpu.core_type<tc>, window_params = [{transform_indices = @transform_0, window_bounds = array<i64: 16, 896>}, {transform_indices = @transform_1, window_bounds = array<i64: 896, 256>}, {pipeline_mode = #tpu.pipeline_mode<synchronous>, transform_indices = @transform_2, window_bounds = array<i64: 1, 256>}, {pipeline_mode = #tpu.pipeline_mode<synchronous>, transform_indices = @transform_3, window_bounds = array<i64: 256, 128>}, {pipeline_mode = #tpu.pipeline_mode<synchronous>, transform_indices = @transform_4, window_bounds = array<i64: 1, 128>}, {pipeline_mode = #tpu.pipeline_mode<synchronous>, transform_indices = @transform_5, window_bounds = array<i64: 128, 64>}, {pipeline_mode = #tpu.pipeline_mode<synchronous>, transform_indices = @transform_6, window_bounds = array<i64: 1, 64>}, {pipeline_mode = #tpu.pipeline_mode<synchronous>, transform_indices = @transform_7, window_bounds = array<i64: 64, 128>}, {pipeline_mode = #tpu.pipeline_mode<synchronous>, transform_indices = @transform_8, window_bounds = array<i64: 1, 128>}, {transform_indices = @transform_9, window_bounds = array<i64: 16, 128>}]} {
    %c0_i32 = arith.constant 0 : i32
    %0 = arith.cmpi eq, %arg1, %c0_i32 : i32
    %1 = arith.extui %0 : i1 to i32
    %c0_i32_0 = arith.constant 0 : i32
    %2 = arith.cmpi ne, %1, %c0_i32_0 : i32
    scf.if %2 {
      %c0_10 = arith.constant 0 : index
      %c0_11 = arith.constant 0 : index
      %13 = vector.load %arg4[%c0_10, %c0_11] : memref<1x256xf32, #tpu.memory_space<vmem>>, vector<1x256xf32>
      %14 = vector.shape_cast %13 : vector<1x256xf32> to vector<1x256xf32>
      %15 = vector.broadcast %14 : vector<1x256xf32> to vector<16x256xf32>
      %c0_12 = arith.constant 0 : index
      %c0_13 = arith.constant 0 : index
      %16 = vector.load %arg12[%c0_12, %c0_13] : memref<16x256xf32, #tpu.memory_space<vmem>>, vector<16x256xf32>
      tpu.vector_store %arg12[%c0_12, %c0_13], %15 {strides = array<i32>} : memref<16x256xf32, #tpu.memory_space<vmem>>, vector<16x256xf32>,
    } else {
    }
    %c0 = arith.constant 0 : index
    %c0_1 = arith.constant 0 : index
    %3 = vector.load %arg12[%c0, %c0_1] : memref<16x256xf32, #tpu.memory_space<vmem>>, vector<16x256xf32>
    %c0_2 = arith.constant 0 : index
    %c0_3 = arith.constant 0 : index
    %4 = vector.load %arg2[%c0_2, %c0_3] : memref<16x896xf32, #tpu.memory_space<vmem>>, vector<16x896xf32>
    %5 = arith.truncf %4 : vector<16x896xf32> to vector<16x896xbf16>
    %c0_4 = arith.constant 0 : index
    %c0_5 = arith.constant 0 : index
    %6 = vector.load %arg3[%c0_4, %c0_5] : memref<896x256xbf16, #tpu.memory_space<vmem>>, vector<896x256xbf16>
    %cst = arith.constant dense<0.000000e+00> : vector<16x256xf32>
    %7 = tpu.matmul %5, %6, %cst {dimension_numbers = #tpu.dot_dimension_numbers<[1], [0], [0], [1], [0, 0, 1, 1], [], []>} : vector<16x896xbf16>, vector<896x256xbf16>, vector<16x256xf32> -> vector<16x256xf32>
    %8 = arith.addf %3, %7 : vector<16x256xf32>
    %c0_6 = arith.constant 0 : index
    %c0_7 = arith.constant 0 : index
    %9 = vector.load %arg12[%c0_6, %c0_7] : memref<16x256xf32, #tpu.memory_space<vmem>>, vector<16x256xf32>
    tpu.vector_store %arg12[%c0_6, %c0_7], %8 {strides = array<i32>} : memref<16x256xf32, #tpu.memory_space<vmem>>, vector<16x256xf32>,
    %c0_i32_8 = arith.constant 0 : i32
    %10 = arith.cmpi eq, %arg1, %c0_i32_8 : i32
    %11 = arith.extui %10 : i1 to i32
    %c0_i32_9 = arith.constant 0 : i32
    %12 = arith.cmpi ne, %11, %c0_i32_9 : i32
    scf.if %12 {
      %c0_10 = arith.constant 0 : index
      %c0_11 = arith.constant 0 : index
      %13 = vector.load %arg12[%c0_10, %c0_11] : memref<16x256xf32, #tpu.memory_space<vmem>>, vector<16x256xf32>
      %cst_12 = arith.constant 2.000000e+01 : f32
      %14 = vector.broadcast %cst_12 : f32 to vector<16x256xf32>
      %15 = arith.cmpf ogt, %13, %14 : vector<16x256xf32>
      %cst_13 = arith.constant 2.000000e+01 : f32
      %16 = vector.broadcast %cst_13 : f32 to vector<16x256xf32>
      %17 = arith.minimumf %13, %16 : vector<16x256xf32>
      %18 = math.exp %17 : vector<16x256xf32>
      %19 = math.log1p %18 : vector<16x256xf32>
      %20 = arith.select %15, %13, %19 : vector<16x256xi1>, vector<16x256xf32>
      %c0_14 = arith.constant 0 : index
      %c0_15 = arith.constant 0 : index
      %21 = vector.load %arg5[%c0_14, %c0_15] : memref<256x128xf32, #tpu.memory_space<vmem>>, vector<256x128xf32>
      %cst_16 = arith.constant dense<0.000000e+00> : vector<16x128xf32>
      %22 = tpu.matmul %20, %21, %cst_16 {dimension_numbers = #tpu.dot_dimension_numbers<[1], [0], [0], [1], [0, 0, 1, 1], [], []>} : vector<16x256xf32>, vector<256x128xf32>, vector<16x128xf32> -> vector<16x128xf32>
      %c0_17 = arith.constant 0 : index
      %c0_18 = arith.constant 0 : index
      %23 = vector.load %arg6[%c0_17, %c0_18] : memref<1x128xf32, #tpu.memory_space<vmem>>, vector<1x128xf32>
      %24 = vector.broadcast %23 : vector<1x128xf32> to vector<16x128xf32>
      %25 = arith.addf %22, %24 : vector<16x128xf32>
      %cst_19 = arith.constant 2.000000e+01 : f32
      %26 = vector.broadcast %cst_19 : f32 to vector<16x128xf32>
      %27 = arith.cmpf ogt, %25, %26 : vector<16x128xf32>
      %cst_20 = arith.constant 2.000000e+01 : f32
      %28 = vector.broadcast %cst_20 : f32 to vector<16x128xf32>
      %29 = arith.minimumf %25, %28 : vector<16x128xf32>
      %30 = math.exp %29 : vector<16x128xf32>
      %31 = math.log1p %30 : vector<16x128xf32>
      %32 = arith.select %27, %25, %31 : vector<16x128xi1>, vector<16x128xf32>
      %c0_21 = arith.constant 0 : index
      %c0_22 = arith.constant 0 : index
      %33 = vector.load %arg7[%c0_21, %c0_22] : memref<128x64xf32, #tpu.memory_space<vmem>>, vector<128x64xf32>
      %cst_23 = arith.constant dense<0.000000e+00> : vector<16x64xf32>
      %34 = tpu.matmul %32, %33, %cst_23 {dimension_numbers = #tpu.dot_dimension_numbers<[1], [0], [0], [1], [0, 0, 1, 1], [], []>} : vector<16x128xf32>, vector<128x64xf32>, vector<16x64xf32> -> vector<16x64xf32>
      %c0_24 = arith.constant 0 : index
      %c0_25 = arith.constant 0 : index
      %35 = vector.load %arg8[%c0_24, %c0_25] : memref<1x64xf32, #tpu.memory_space<vmem>>, vector<1x64xf32>
      %36 = vector.broadcast %35 : vector<1x64xf32> to vector<16x64xf32>
      %37 = arith.addf %34, %36 : vector<16x64xf32>
      %cst_26 = arith.constant 2.000000e+01 : f32
      %38 = vector.broadcast %cst_26 : f32 to vector<16x64xf32>
      %39 = arith.cmpf ogt, %37, %38 : vector<16x64xf32>
      %cst_27 = arith.constant 2.000000e+01 : f32
      %40 = vector.broadcast %cst_27 : f32 to vector<16x64xf32>
      %41 = arith.minimumf %37, %40 : vector<16x64xf32>
      %42 = math.exp %41 : vector<16x64xf32>
      %43 = math.log1p %42 : vector<16x64xf32>
      %44 = arith.select %39, %37, %43 : vector<16x64xi1>, vector<16x64xf32>
      %c0_28 = arith.constant 0 : index
      %c0_29 = arith.constant 0 : index
      %45 = vector.load %arg9[%c0_28, %c0_29] : memref<64x128xf32, #tpu.memory_space<vmem>>, vector<64x128xf32>
      %cst_30 = arith.constant dense<0.000000e+00> : vector<16x128xf32>
      %46 = tpu.matmul %44, %45, %cst_30 {dimension_numbers = #tpu.dot_dimension_numbers<[1], [0], [0], [1], [0, 0, 1, 1], [], []>} : vector<16x64xf32>, vector<64x128xf32>, vector<16x128xf32> -> vector<16x128xf32>
      %c0_31 = arith.constant 0 : index
      %c0_32 = arith.constant 0 : index
      %47 = vector.load %arg10[%c0_31, %c0_32] : memref<1x128xf32, #tpu.memory_space<vmem>>, vector<1x128xf32>
      %48 = vector.broadcast %47 : vector<1x128xf32> to vector<16x128xf32>
      %49 = arith.addf %46, %48 : vector<16x128xf32>
      %cst_33 = arith.constant dense<0xFF800000> : vector<16xf32>
      %50 = vector.multi_reduction <maximumf>, %49, %cst_33 [1] : vector<16x128xf32> to vector<16xf32>
      %51 = vector.shape_cast %50 : vector<16xf32> to vector<16x1xf32>
      %52 = vector.broadcast %51 : vector<16x1xf32> to vector<16x128xf32>
      %53 = arith.subf %49, %52 : vector<16x128xf32>
      %54 = math.exp %53 : vector<16x128xf32>
      %cst_34 = arith.constant dense<0.000000e+00> : vector<16xf32>
      %55 = vector.multi_reduction <add>, %54, %cst_34 [1] : vector<16x128xf32> to vector<16xf32>
      %56 = vector.shape_cast %55 : vector<16xf32> to vector<16x1xf32>
      %57 = math.log %56 : vector<16x1xf32>
      %58 = arith.addf %57, %51 : vector<16x1xf32>
      %59 = vector.broadcast %58 : vector<16x1xf32> to vector<16x128xf32>
      %60 = arith.subf %49, %59 : vector<16x128xf32>
      %c0_35 = arith.constant 0 : index
      %c0_36 = arith.constant 0 : index
      %61 = vector.load %arg11[%c0_35, %c0_36] : memref<16x128xf32, #tpu.memory_space<vmem>>, vector<16x128xf32>
      tpu.vector_store %arg11[%c0_35, %c0_36], %60 {strides = array<i32>} : memref<16x128xf32, #tpu.memory_space<vmem>>, vector<16x128xf32>,
    } else {
    }
    return
  }
  func.func @transform_0(%arg0: i32, %arg1: i32) -> (i32, i32) {
    %c0_i32 = arith.constant 0 : i32
    return %arg0, %arg1 : i32, i32
  }
  func.func @transform_1(%arg0: i32, %arg1: i32) -> (i32, i32) {
    %c0_i32 = arith.constant 0 : i32
    %c0_i32_0 = arith.constant 0 : i32
    return %arg1, %c0_i32 : i32, i32
  }
  func.func @transform_2(%arg0: i32, %arg1: i32) -> (i32, i32) {
    %c0_i32 = arith.constant 0 : i32
    %c0_i32_0 = arith.constant 0 : i32
    %c0_i32_1 = arith.constant 0 : i32
    return %c0_i32, %c0_i32_0 : i32, i32
  }
  func.func @transform_3(%arg0: i32, %arg1: i32) -> (i32, i32) {
    %c0_i32 = arith.constant 0 : i32
    %c0_i32_0 = arith.constant 0 : i32
    %c0_i32_1 = arith.constant 0 : i32
    return %c0_i32, %c0_i32_0 : i32, i32
  }
  func.func @transform_4(%arg0: i32, %arg1: i32) -> (i32, i32) {
    %c0_i32 = arith.constant 0 : i32
    %c0_i32_0 = arith.constant 0 : i32
    %c0_i32_1 = arith.constant 0 : i32
    return %c0_i32, %c0_i32_0 : i32, i32
  }
  func.func @transform_5(%arg0: i32, %arg1: i32) -> (i32, i32) {
    %c0_i32 = arith.constant 0 : i32
    %c0_i32_0 = arith.constant 0 : i32
    %c0_i32_1 = arith.constant 0 : i32
    return %c0_i32, %c0_i32_0 : i32, i32
  }
  func.func @transform_6(%arg0: i32, %arg1: i32) -> (i32, i32) {
    %c0_i32 = arith.constant 0 : i32
    %c0_i32_0 = arith.constant 0 : i32
    %c0_i32_1 = arith.constant 0 : i32
    return %c0_i32, %c0_i32_0 : i32, i32
  }
  func.func @transform_7(%arg0: i32, %arg1: i32) -> (i32, i32) {
    %c0_i32 = arith.constant 0 : i32
    %c0_i32_0 = arith.constant 0 : i32
    %c0_i32_1 = arith.constant 0 : i32
    return %c0_i32, %c0_i32_0 : i32, i32
  }
  func.func @transform_8(%arg0: i32, %arg1: i32) -> (i32, i32) {
    %c0_i32 = arith.constant 0 : i32
    %c0_i32_0 = arith.constant 0 : i32
    %c0_i32_1 = arith.constant 0 : i32
    return %c0_i32, %c0_i32_0 : i32, i32
  }
  func.func @transform_9(%arg0: i32, %arg1: i32) -> (i32, i32) {
    %c0_i32 = arith.constant 0 : i32
    %c0_i32_0 = arith.constant 0 : i32
    return %arg0, %c0_i32 : i32, i32
  }
}

</mosaic_0001>

<llo_original>
// kernel: forward.1
$region0: #{forward.1}
  #allocation0 [shape = 'u32[]', space=smem, size = 0x4, offset = 0x4, fixed_abs, tag = 'smem constant byte address 0x4 - core index']
  #allocation1 [shape = 'u32[72,128]{1,0:T(1,128)}', space=vmem, size = 0x9000, scoped, tag = 'internal scratch']
  #allocation2 [shape = 'f32[16,256]{1,0:T(8,128)}', space=vmem, size = 0x4000, scoped, tag = 'scratch operand']
  %s0 = inlined_call_operand.vmem [shape: f32[16,896], index: 0, kind: input, shape index: {}]
  %s1 = inlined_call_operand.hbm [shape: bf16[896,256], index: 1, kind: input, shape index: {}]
  %s2 = inlined_call_operand.vmem [shape: f32[1,256], index: 2, kind: input, shape index: {}]
  %s3 = inlined_call_operand.vmem [shape: f32[256,128], index: 3, kind: input, shape index: {}]
  %s4 = inlined_call_operand.vmem [shape: f32[1,128], index: 4, kind: input, shape index: {}]
  %s5 = inlined_call_operand.vmem [shape: f32[128,64], index: 5, kind: input, shape index: {}]
  %s6 = inlined_call_operand.vmem [shape: f32[1,64], index: 6, kind: input, shape index: {}]
  %s7 = inlined_call_operand.vmem [shape: f32[64,128], index: 7, kind: input, shape index: {}]
  %s8 = inlined_call_operand.vmem [shape: f32[1,128], index: 8, kind: input, shape index: {}]
  %s9 = inlined_call_operand.vmem [shape: f32[16,128], index: 9, kind: output, shape index: {}]
  %s10 = sld [smem:[#allocation0]]
  $region58: #{forward.1} parent=0
    _
  %s12 = ssub.s32 1, %s10
  %s13 = scalar_select 0, %s12, %s10
  $region1: #{forward.1} parent=0
    #allocation3 [shape = 'u8[458752]{0}', space=vmem, size = 0x70000, scoped, tag = 'input window, operand 1, single buffered']
    #allocation4 [shape = 's32[1]{0}', space=sflag, size = 0x4, scoped, tag = 'scoped memory for forward.1']
    %14 = vsyncpa [#allocation4], 0
    // Predicated region
    $region2: #{forward.1} parent=1 // pred_check
      _
    $region3: #{forward.1} parent=1 // pred_check_branch
      %16 = sbr.rel (0) target = $region5
    $region4: #{forward.1} parent=1 // pred_region
      _
    $region5: #{forward.1} parent=1 // pred_fallthru
      _
    // Predicated region
    $region6: #{forward.1} parent=1 // pred_check
      _
    $region7: #{forward.1} parent=1 // pred_check_branch
      %18 = sbr.rel (0) target = $region9
    $region8: #{forward.1} parent=1 // pred_region
      %20 = vsyncadd [#allocation4], 0
      %s21 = sshll.u32 %s1, 4
      %s22 = int_to_ptr.hbm [resolvable:$true] %s21
      %s23 = sshll.u32 [#allocation3], 4
      %s24 = int_to_ptr.vmem [resolvable:$true] %s23
      %29 = dma.hbm_to_vmem [thread:$0]  %s22, 14336, %s24, [#allocation4], 128, 128, 8
    $region9: #{forward.1} parent=1 // pred_fallthru
      _
    // Predicated region
    $region10: #{forward.1} parent=1 // pred_check
      _
    $region11: #{forward.1} parent=1 // pred_check_branch
      %31 = sbr.rel (0) target = $region13
    $region12: #{forward.1} parent=1 // pred_region
      _
    $region13: #{forward.1} parent=1 // pred_fallthru
      _
    // Predicated region
    $region14: #{forward.1} parent=1 // pred_check
      _
    $region15: #{forward.1} parent=1 // pred_check_branch
      %33 = sbr.rel (0) target = $region17
    $region16: #{forward.1} parent=1 // pred_region
      _
    $region17: #{forward.1} parent=1 // pred_fallthru
      _
    // Predicated region
    $region18: #{forward.1} parent=1 // pred_check
      _
    $region19: #{forward.1} parent=1 // pred_check_branch
      %35 = sbr.rel (0) target = $region21
    $region20: #{forward.1} parent=1 // pred_region
      _
    $region21: #{forward.1} parent=1 // pred_fallthru
      _
    // Predicated region
    $region22: #{forward.1} parent=1 // pred_check
      _
    $region23: #{forward.1} parent=1 // pred_check_branch
      %37 = sbr.rel (0) target = $region25
    $region24: #{forward.1} parent=1 // pred_region
      _
    $region25: #{forward.1} parent=1 // pred_fallthru
      _
    // Predicated region
    $region26: #{forward.1} parent=1 // pred_check
      _
    $region27: #{forward.1} parent=1 // pred_check_branch
      %39 = sbr.rel (0) target = $region29
    $region28: #{forward.1} parent=1 // pred_region
      _
    $region29: #{forward.1} parent=1 // pred_fallthru
      _
    // Predicated region
    $region30: #{forward.1} parent=1 // pred_check
      _
    $region31: #{forward.1} parent=1 // pred_check_branch
      %41 = sbr.rel (0) target = $region33
    $region32: #{forward.1} parent=1 // pred_region
      _
    $region33: #{forward.1} parent=1 // pred_fallthru
      _
    // Predicated region
    $region34: #{forward.1} parent=1 // pred_check
      _
    $region35: #{forward.1} parent=1 // pred_check_branch
      %43 = sbr.rel (0) target = $region37
    $region36: #{forward.1} parent=1 // pred_region
      _
    $region37: #{forward.1} parent=1 // pred_fallthru
      _
    // Predicated region
    $region38: #{forward.1} parent=1 // pred_check
      _
    $region39: #{forward.1} parent=1 // pred_check_branch
      %45 = sbr.rel (0) target = $region41
    $region40: #{forward.1} parent=1 // pred_region
      %47 = dma.done [#allocation4], 14336
    $region41: #{forward.1} parent=1 // pred_fallthru
      _
    %p48 = scmp.eq.s32.totalorder 0, 0
    // Predicated region
    $region42: #{forward.1} parent=1 // pred_check
      %p49 = pneg %p48
    $region43: #{forward.1} parent=1 // pred_check_branch
      %51 = sbr.rel (%p49) target = $region45
    $region44: #{forward.1} parent=1 // pred_region
      %v52 = vld [vmem:[%s2] sm:$0x3]
      %v54 = vperm.slane %v52, 0
      %v55 = vperm.slane %v52, 1
      %58 = vst [vmem:[#allocation2] sm:$0xff] %v54
      %59 = vst [vmem:[#allocation2 + $0x8] sm:$0xff] %v55
      %60 = vst [vmem:[#allocation2 + $0x10] sm:$0xff] %v54
      %61 = vst [vmem:[#allocation2 + $0x18] sm:$0xff] %v55
    $region45: #{forward.1} parent=1 // pred_fallthru
      _
    %v62 = vld [vmem:[#allocation2] sm:$0xff]
    %v63 = vld [vmem:[#allocation2 + $0x8] sm:$0xff]
    %v64 = vld [vmem:[#allocation2 + $0x10] sm:$0xff]
    %v65 = vld [vmem:[#allocation2 + $0x18] sm:$0xff]
    %v66 = vld [vmem:[%s0] sm:$0xff]
    %v67 = vld [vmem:[%s0 + $0x8] sm:$0xff]
    %v68 = vld [vmem:[%s0 + $0x10] sm:$0xff]
    %v69 = vld [vmem:[%s0 + $0x18] sm:$0xff]
    %v70 = vld [vmem:[%s0 + $0x20] sm:$0xff]
    %v71 = vld [vmem:[%s0 + $0x28] sm:$0xff]
    %v72 = vld [vmem:[%s0 + $0x30] sm:$0xff]
    %v73 = vld [vmem:[%s0 + $0x38] sm:$0xff]
    %v74 = vld [vmem:[%s0 + $0x40] sm:$0xff]
    %v75 = vld [vmem:[%s0 + $0x48] sm:$0xff]
    %v76 = vld [vmem:[%s0 + $0x50] sm:$0xff]
    %v77 = vld [vmem:[%s0 + $0x58] sm:$0xff]
    %v78 = vld [vmem:[%s0 + $0x60] sm:$0xff]
    %v79 = vld [vmem:[%s0 + $0x68] sm:$0xff]
    %v80 = vpack.c.bf16 %v73, %v66
    %v81 = vpack.c.bf16 %v74, %v67
    %v82 = vpack.c.bf16 %v75, %v68
    %v83 = vpack.c.bf16 %v76, %v69
    %v84 = vpack.c.bf16 %v77, %v70
    %v85 = vpack.c.bf16 %v78, %v71
    %v86 = vpack.c.bf16 %v79, %v72
    %v87 = vld [vmem:[#allocation3] sm:$0xff]
    %v88 = vld [vmem:[#allocation3 + $0x8] sm:$0xff]
    %v89 = vld [vmem:[#allocation3 + $0x10] sm:$0xff]
    %v90 = vld [vmem:[#allocation3 + $0x18] sm:$0xff]
    %v91 = vld [vmem:[#allocation3 + $0x20] sm:$0xff]
    %v92 = vld [vmem:[#allocation3 + $0x28] sm:$0xff]
    %v93 = vld [vmem:[#allocation3 + $0x30] sm:$0xff]
    %v94 = vld [vmem:[#allocation3 + $0x38] sm:$0xff]
    %v95 = vld [vmem:[#allocation3 + $0x40] sm:$0xff]
    %v96 = vld [vmem:[#allocation3 + $0x48] sm:$0xff]
    %v97 = vld [vmem:[#allocation3 + $0x50] sm:$0xff]
    %v98 = vld [vmem:[#allocation3 + $0x58] sm:$0xff]
    %v99 = vld [vmem:[#allocation3 + $0x60] sm:$0xff]
    %v100 = vld [vmem:[#allocation3 + $0x68] sm:$0xff]
    %v101 = vld [vmem:[#allocation3 + $0x70] sm:$0xff]
    %v102 = vld [vmem:[#allocation3 + $0x78] sm:$0xff]
    %v103 = vld [vmem:[#allocation3 + $0x80] sm:$0xff]
    %v104 = vld [vmem:[#allocation3 + $0x88] sm:$0xff]
    %v105 = vld [vmem:[#allocation3 + $0x90] sm:$0xff]
    %v106 = vld [vmem:[#allocation3 + $0x98] sm:$0xff]
    %v107 = vld [vmem:[#allocation3 + $0xa0] sm:$0xff]
    %v108 = vld [vmem:[#allocation3 + $0xa8] sm:$0xff]
    %v109 = vld [vmem:[#allocation3 + $0xb0] sm:$0xff]
    %v110 = vld [vmem:[#allocation3 + $0xb8] sm:$0xff]
    %v111 = vld [vmem:[#allocation3 + $0xc0] sm:$0xff]
    %v112 = vld [vmem:[#allocation3 + $0xc8] sm:$0xff]
    %v113 = vld [vmem:[#allocation3 + $0xd0] sm:$0xff]
    %v114 = vld [vmem:[#allocation3 + $0xd8] sm:$0xff]
    %v115 = vld [vmem:[#allocation3 + $0xe0] sm:$0xff]
    %v116 = vld [vmem:[#allocation3 + $0xe8] sm:$0xff]
    %v117 = vld [vmem:[#allocation3 + $0xf0] sm:$0xff]
    %v118 = vld [vmem:[#allocation3 + $0xf8] sm:$0xff]
    %v119 = vld [vmem:[#allocation3 + $0x100] sm:$0xff]
    %v120 = vld [vmem:[#allocation3 + $0x108] sm:$0xff]
    %v121 = vld [vmem:[#allocation3 + $0x110] sm:$0xff]
    %v122 = vld [vmem:[#allocation3 + $0x118] sm:$0xff]
    %v123 = vld [vmem:[#allocation3 + $0x120] sm:$0xff]
    %v124 = vld [vmem:[#allocation3 + $0x128] sm:$0xff]
    %v125 = vld [vmem:[#allocation3 + $0x130] sm:$0xff]
    %v126 = vld [vmem:[#allocation3 + $0x138] sm:$0xff]
    %v127 = vld [vmem:[#allocation3 + $0x140] sm:$0xff]
    %v128 = vld [vmem:[#allocation3 + $0x148] sm:$0xff]
    %v129 = vld [vmem:[#allocation3 + $0x150] sm:$0xff]
    %v130 = vld [vmem:[#allocation3 + $0x158] sm:$0xff]
    %v131 = vld [vmem:[#allocation3 + $0x160] sm:$0xff]
    %v132 = vld [vmem:[#allocation3 + $0x168] sm:$0xff]
    %v133 = vld [vmem:[#allocation3 + $0x170] sm:$0xff]
    %v134 = vld [vmem:[#allocation3 + $0x178] sm:$0xff]
    %v135 = vld [vmem:[#allocation3 + $0x180] sm:$0xff]
    %v136 = vld [vmem:[#allocation3 + $0x188] sm:$0xff]
    %v137 = vld [vmem:[#allocation3 + $0x190] sm:$0xff]
    %v138 = vld [vmem:[#allocation3 + $0x198] sm:$0xff]
    %v139 = vld [vmem:[#allocation3 + $0x1a0] sm:$0xff]
    %v140 = vld [vmem:[#allocation3 + $0x1a8] sm:$0xff]
    %v141 = vld [vmem:[#allocation3 + $0x1b0] sm:$0xff]
    %v142 = vld [vmem:[#allocation3 + $0x1b8] sm:$0xff]
    %v143 = vld [vmem:[#allocation3 + $0x1c0] sm:$0xff]
    %v144 = vld [vmem:[#allocation3 + $0x1c8] sm:$0xff]
    %v145 = vld [vmem:[#allocation3 + $0x1d0] sm:$0xff]
    %v146 = vld [vmem:[#allocation3 + $0x1d8] sm:$0xff]
    %v147 = vld [vmem:[#allocation3 + $0x1e0] sm:$0xff]
    %v148 = vld [vmem:[#allocation3 + $0x1e8] sm:$0xff]
    %v149 = vld [vmem:[#allocation3 + $0x1f0] sm:$0xff]
    %v150 = vld [vmem:[#allocation3 + $0x1f8] sm:$0xff]
    %v151 = vld [vmem:[#allocation3 + $0x200] sm:$0xff]
    %v152 = vld [vmem:[#allocation3 + $0x208] sm:$0xff]
    %v153 = vld [vmem:[#allocation3 + $0x210] sm:$0xff]
    %v154 = vld [vmem:[#allocation3 + $0x218] sm:$0xff]
    %v155 = vld [vmem:[#allocation3 + $0x220] sm:$0xff]
    %v156 = vld [vmem:[#allocation3 + $0x228] sm:$0xff]
    %v157 = vld [vmem:[#allocation3 + $0x230] sm:$0xff]
    %v158 = vld [vmem:[#allocation3 + $0x238] sm:$0xff]
    %v159 = vld [vmem:[#allocation3 + $0x240] sm:$0xff]
    %v160 = vld [vmem:[#allocation3 + $0x248] sm:$0xff]
    %v161 = vld [vmem:[#allocation3 + $0x250] sm:$0xff]
    %v162 = vld [vmem:[#allocation3 + $0x258] sm:$0xff]
    %v163 = vld [vmem:[#allocation3 + $0x260] sm:$0xff]
    %v164 = vld [vmem:[#allocation3 + $0x268] sm:$0xff]
    %v165 = vld [vmem:[#allocation3 + $0x270] sm:$0xff]
    %v166 = vld [vmem:[#allocation3 + $0x278] sm:$0xff]
    %v167 = vld [vmem:[#allocation3 + $0x280] sm:$0xff]
    %v168 = vld [vmem:[#allocation3 + $0x288] sm:$0xff]
    %v169 = vld [vmem:[#allocation3 + $0x290] sm:$0xff]
    %v170 = vld [vmem:[#allocation3 + $0x298] sm:$0xff]
    %v171 = vld [vmem:[#allocation3 + $0x2a0] sm:$0xff]
    %v172 = vld [vmem:[#allocation3 + $0x2a8] sm:$0xff]
    %v173 = vld [vmem:[#allocation3 + $0x2b0] sm:$0xff]
    %v174 = vld [vmem:[#allocation3 + $0x2b8] sm:$0xff]
    %v175 = vld [vmem:[#allocation3 + $0x2c0] sm:$0xff]
    %v176 = vld [vmem:[#allocation3 + $0x2c8] sm:$0xff]
    %v177 = vld [vmem:[#allocation3 + $0x2d0] sm:$0xff]
    %v178 = vld [vmem:[#allocation3 + $0x2d8] sm:$0xff]
    %v179 = vld [vmem:[#allocation3 + $0x2e0] sm:$0xff]
    %v180 = vld [vmem:[#allocation3 + $0x2e8] sm:$0xff]
    %v181 = vld [vmem:[#allocation3 + $0x2f0] sm:$0xff]
    %v182 = vld [vmem:[#allocation3 + $0x2f8] sm:$0xff]
    %v183 = vld [vmem:[#allocation3 + $0x300] sm:$0xff]
    %v184 = vld [vmem:[#allocation3 + $0x308] sm:$0xff]
    %v185 = vld [vmem:[#allocation3 + $0x310] sm:$0xff]
    %v186 = vld [vmem:[#allocation3 + $0x318] sm:$0xff]
    %v187 = vld [vmem:[#allocation3 + $0x320] sm:$0xff]
    %v188 = vld [vmem:[#allocation3 + $0x328] sm:$0xff]
    %v189 = vld [vmem:[#allocation3 + $0x330] sm:$0xff]
    %v190 = vld [vmem:[#allocation3 + $0x338] sm:$0xff]
    %v191 = vld [vmem:[#allocation3 + $0x340] sm:$0xff]
    %v192 = vld [vmem:[#allocation3 + $0x348] sm:$0xff]
    %v193 = vld [vmem:[#allocation3 + $0x350] sm:$0xff]
    %v194 = vld [vmem:[#allocation3 + $0x358] sm:$0xff]
    %v195 = vld [vmem:[#allocation3 + $0x360] sm:$0xff]
    %v196 = vld [vmem:[#allocation3 + $0x368] sm:$0xff]
    %v197 = vld [vmem:[#allocation3 + $0x370] sm:$0xff]
    %v198 = vld [vmem:[#allocation3 + $0x378] sm:$0xff]
    %v311 = vunpack.c.l.b16 %v87
    %v312 = vunpack.c.h.b16 %v87
    %v313 = vunpack.c.l.b16 %v88
    %v314 = vunpack.c.h.b16 %v88
    %v315 = vunpack.c.l.b16 %v89
    %v316 = vunpack.c.h.b16 %v89
    %v317 = vunpack.c.l.b16 %v90
    %v318 = vunpack.c.h.b16 %v90
    %v319 = vunpack.c.l.b16 %v91
    %v320 = vunpack.c.h.b16 %v91
    %v321 = vunpack.c.l.b16 %v92
    %v322 = vunpack.c.h.b16 %v92
    %v323 = vunpack.c.l.b16 %v93
    %v324 = vunpack.c.h.b16 %v93
    %v325 = vunpack.c.l.b16 %v94
    %v326 = vunpack.c.h.b16 %v94
    %v327 = vunpack.c.l.b16 %v95
    %v328 = vunpack.c.h.b16 %v95
    %v329 = vunpack.c.l.b16 %v96
    %v330 = vunpack.c.h.b16 %v96
    %v331 = vunpack.c.l.b16 %v97
    %v332 = vunpack.c.h.b16 %v97
    %v333 = vunpack.c.l.b16 %v98
    %v334 = vunpack.c.h.b16 %v98
    %v335 = vunpack.c.l.b16 %v99
    %v336 = vunpack.c.h.b16 %v99
    %v337 = vunpack.c.l.b16 %v100
    %v338 = vunpack.c.h.b16 %v100
    %v339 = vunpack.c.l.b16 %v101
    %v340 = vunpack.c.h.b16 %v101
    %v341 = vunpack.c.l.b16 %v102
    %v342 = vunpack.c.h.b16 %v102
    %v343 = vunpack.c.l.b16 %v103
    %v344 = vunpack.c.h.b16 %v103
    %v345 = vunpack.c.l.b16 %v104
    %v346 = vunpack.c.h.b16 %v104
    %v347 = vunpack.c.l.b16 %v105
    %v348 = vunpack.c.h.b16 %v105
    %v349 = vunpack.c.l.b16 %v106
    %v350 = vunpack.c.h.b16 %v106
    %v351 = vunpack.c.l.b16 %v107
    %v352 = vunpack.c.h.b16 %v107
    %v353 = vunpack.c.l.b16 %v108
    %v354 = vunpack.c.h.b16 %v108
    %v355 = vunpack.c.l.b16 %v109
    %v356 = vunpack.c.h.b16 %v109
    %v357 = vunpack.c.l.b16 %v110
    %v358 = vunpack.c.h.b16 %v110
    %v359 = vunpack.c.l.b16 %v111
    %v360 = vunpack.c.h.b16 %v111
    %v361 = vunpack.c.l.b16 %v112
    %v362 = vunpack.c.h.b16 %v112
    %v363 = vunpack.c.l.b16 %v113
    %v364 = vunpack.c.h.b16 %v113
    %v365 = vunpack.c.l.b16 %v114
    %v366 = vunpack.c.h.b16 %v114
    %v367 = vunpack.c.l.b16 %v115
    %v368 = vunpack.c.h.b16 %v115
    %v369 = vunpack.c.l.b16 %v116
    %v370 = vunpack.c.h.b16 %v116
    %v371 = vunpack.c.l.b16 %v117
    %v372 = vunpack.c.h.b16 %v117
    %v373 = vunpack.c.l.b16 %v118
    %v374 = vunpack.c.h.b16 %v118
    %v375 = vunpack.c.l.b16 %v119
    %v376 = vunpack.c.h.b16 %v119
    %v377 = vunpack.c.l.b16 %v120
    %v378 = vunpack.c.h.b16 %v120
    %v379 = vunpack.c.l.b16 %v121
    %v380 = vunpack.c.h.b16 %v121
    %v381 = vunpack.c.l.b16 %v122
    %v382 = vunpack.c.h.b16 %v122
    %v383 = vunpack.c.l.b16 %v123
    %v384 = vunpack.c.h.b16 %v123
    %v385 = vunpack.c.l.b16 %v124
    %v386 = vunpack.c.h.b16 %v124
    %v387 = vunpack.c.l.b16 %v125
    %v388 = vunpack.c.h.b16 %v125
    %v389 = vunpack.c.l.b16 %v126
    %v390 = vunpack.c.h.b16 %v126
    %v391 = vunpack.c.l.b16 %v127
    %v392 = vunpack.c.h.b16 %v127
    %v393 = vunpack.c.l.b16 %v128
    %v394 = vunpack.c.h.b16 %v128
    %v395 = vunpack.c.l.b16 %v129
    %v396 = vunpack.c.h.b16 %v129
    %v397 = vunpack.c.l.b16 %v130
    %v398 = vunpack.c.h.b16 %v130
    %v399 = vunpack.c.l.b16 %v131
    %v400 = vunpack.c.h.b16 %v131
    %v401 = vunpack.c.l.b16 %v132
    %v402 = vunpack.c.h.b16 %v132
    %v403 = vunpack.c.l.b16 %v133
    %v404 = vunpack.c.h.b16 %v133
    %v405 = vunpack.c.l.b16 %v134
    %v406 = vunpack.c.h.b16 %v134
    %v407 = vunpack.c.l.b16 %v135
    %v408 = vunpack.c.h.b16 %v135
    %v409 = vunpack.c.l.b16 %v136
    %v410 = vunpack.c.h.b16 %v136
    %v411 = vunpack.c.l.b16 %v137
    %v412 = vunpack.c.h.b16 %v137
    %v413 = vunpack.c.l.b16 %v138
    %v414 = vunpack.c.h.b16 %v138
    %v415 = vunpack.c.l.b16 %v139
    %v416 = vunpack.c.h.b16 %v139
    %v417 = vunpack.c.l.b16 %v140
    %v418 = vunpack.c.h.b16 %v140
    %v419 = vunpack.c.l.b16 %v141
    %v420 = vunpack.c.h.b16 %v141
    %v421 = vunpack.c.l.b16 %v142
    %v422 = vunpack.c.h.b16 %v142
    %v423 = vunpack.c.l.b16 %v143
    %v424 = vunpack.c.h.b16 %v143
    %v425 = vunpack.c.l.b16 %v144
    %v426 = vunpack.c.h.b16 %v144
    %v427 = vunpack.c.l.b16 %v145
    %v428 = vunpack.c.h.b16 %v145
    %v429 = vunpack.c.l.b16 %v146
    %v430 = vunpack.c.h.b16 %v146
    %v431 = vunpack.c.l.b16 %v147
    %v432 = vunpack.c.h.b16 %v147
    %v433 = vunpack.c.l.b16 %v148
    %v434 = vunpack.c.h.b16 %v148
    %v435 = vunpack.c.l.b16 %v149
    %v436 = vunpack.c.h.b16 %v149
    %v437 = vunpack.c.l.b16 %v150
    %v438 = vunpack.c.h.b16 %v150
    %v439 = vunpack.c.l.b16 %v151
    %v440 = vunpack.c.h.b16 %v151
    %v441 = vunpack.c.l.b16 %v152
    %v442 = vunpack.c.h.b16 %v152
    %v443 = vunpack.c.l.b16 %v153
    %v444 = vunpack.c.h.b16 %v153
    %v445 = vunpack.c.l.b16 %v154
    %v446 = vunpack.c.h.b16 %v154
    %v447 = vunpack.c.l.b16 %v155
    %v448 = vunpack.c.h.b16 %v155
    %v449 = vunpack.c.l.b16 %v156
    %v450 = vunpack.c.h.b16 %v156
    %v451 = vunpack.c.l.b16 %v157
    %v452 = vunpack.c.h.b16 %v157
    %v453 = vunpack.c.l.b16 %v158
    %v454 = vunpack.c.h.b16 %v158
    %v455 = vunpack.c.l.b16 %v159
    %v456 = vunpack.c.h.b16 %v159
    %v457 = vunpack.c.l.b16 %v160
    %v458 = vunpack.c.h.b16 %v160
    %v459 = vunpack.c.l.b16 %v161
    %v460 = vunpack.c.h.b16 %v161
    %v461 = vunpack.c.l.b16 %v162
    %v462 = vunpack.c.h.b16 %v162
    %v463 = vunpack.c.l.b16 %v163
    %v464 = vunpack.c.h.b16 %v163
    %v465 = vunpack.c.l.b16 %v164
    %v466 = vunpack.c.h.b16 %v164
    %v467 = vunpack.c.l.b16 %v165
    %v468 = vunpack.c.h.b16 %v165
    %v469 = vunpack.c.l.b16 %v166
    %v470 = vunpack.c.h.b16 %v166
    %v471 = vunpack.c.l.b16 %v167
    %v472 = vunpack.c.h.b16 %v167
    %v473 = vunpack.c.l.b16 %v168
    %v474 = vunpack.c.h.b16 %v168
    %v475 = vunpack.c.l.b16 %v169
    %v476 = vunpack.c.h.b16 %v169
    %v477 = vunpack.c.l.b16 %v170
    %v478 = vunpack.c.h.b16 %v170
    %v479 = vunpack.c.l.b16 %v171
    %v480 = vunpack.c.h.b16 %v171
    %v481 = vunpack.c.l.b16 %v172
    %v482 = vunpack.c.h.b16 %v172
    %v483 = vunpack.c.l.b16 %v173
    %v484 = vunpack.c.h.b16 %v173
    %v485 = vunpack.c.l.b16 %v174
    %v486 = vunpack.c.h.b16 %v174
    %v487 = vunpack.c.l.b16 %v175
    %v488 = vunpack.c.h.b16 %v175
    %v489 = vunpack.c.l.b16 %v176
    %v490 = vunpack.c.h.b16 %v176
    %v491 = vunpack.c.l.b16 %v177
    %v492 = vunpack.c.h.b16 %v177
    %v493 = vunpack.c.l.b16 %v178
    %v494 = vunpack.c.h.b16 %v178
    %v495 = vunpack.c.l.b16 %v179
    %v496 = vunpack.c.h.b16 %v179
    %v497 = vunpack.c.l.b16 %v180
    %v498 = vunpack.c.h.b16 %v180
    %v499 = vunpack.c.l.b16 %v181
    %v500 = vunpack.c.h.b16 %v181
    %v501 = vunpack.c.l.b16 %v182
    %v502 = vunpack.c.h.b16 %v182
    %v503 = vunpack.c.l.b16 %v183
    %v504 = vunpack.c.h.b16 %v183
    %v505 = vunpack.c.l.b16 %v184
    %v506 = vunpack.c.h.b16 %v184
    %v507 = vunpack.c.l.b16 %v185
    %v508 = vunpack.c.h.b16 %v185
    %v509 = vunpack.c.l.b16 %v186
    %v510 = vunpack.c.h.b16 %v186
    %v511 = vunpack.c.l.b16 %v187
    %v512 = vunpack.c.h.b16 %v187
    %v513 = vunpack.c.l.b16 %v188
    %v514 = vunpack.c.h.b16 %v188
    %v515 = vunpack.c.l.b16 %v189
    %v516 = vunpack.c.h.b16 %v189
    %v517 = vunpack.c.l.b16 %v190
    %v518 = vunpack.c.h.b16 %v190
    %v519 = vunpack.c.l.b16 %v191
    %v520 = vunpack.c.h.b16 %v191
    %v521 = vunpack.c.l.b16 %v192
    %v522 = vunpack.c.h.b16 %v192
    %v523 = vunpack.c.l.b16 %v193
    %v524 = vunpack.c.h.b16 %v193
    %v525 = vunpack.c.l.b16 %v194
    %v526 = vunpack.c.h.b16 %v194
    %v527 = vunpack.c.l.b16 %v195
    %v528 = vunpack.c.h.b16 %v195
    %v529 = vunpack.c.l.b16 %v196
    %v530 = vunpack.c.h.b16 %v196
    %v531 = vunpack.c.l.b16 %v197
    %v532 = vunpack.c.h.b16 %v197
    %v533 = vunpack.c.l.b16 %v198
    %v534 = vunpack.c.h.b16 %v198
    %v535 = vpack.c.b16 %v313, %v311
    %v536 = vpack.c.b16 %v314, %v312
    %v537 = vpack.c.b16 %v317, %v315
    %v538 = vpack.c.b16 %v318, %v316
    %v539 = vpack.c.b16 %v321, %v319
    %v540 = vpack.c.b16 %v322, %v320
    %v541 = vpack.c.b16 %v325, %v323
    %v542 = vpack.c.b16 %v326, %v324
    %v543 = vpack.c.b16 %v329, %v327
    %v544 = vpack.c.b16 %v330, %v328
    %v545 = vpack.c.b16 %v333, %v331
    %v546 = vpack.c.b16 %v334, %v332
    %v547 = vpack.c.b16 %v337, %v335
    %v548 = vpack.c.b16 %v338, %v336
    %v549 = vpack.c.b16 %v341, %v339
    %v550 = vpack.c.b16 %v342, %v340
    %v551 = vpack.c.b16 %v345, %v343
    %v552 = vpack.c.b16 %v346, %v344
    %v553 = vpack.c.b16 %v349, %v347
    %v554 = vpack.c.b16 %v350, %v348
    %v555 = vpack.c.b16 %v353, %v351
    %v556 = vpack.c.b16 %v354, %v352
    %v557 = vpack.c.b16 %v357, %v355
    %v558 = vpack.c.b16 %v358, %v356
    %v559 = vpack.c.b16 %v361, %v359
    %v560 = vpack.c.b16 %v362, %v360
    %v561 = vpack.c.b16 %v365, %v363
    %v562 = vpack.c.b16 %v366, %v364
    %v563 = vpack.c.b16 %v369, %v367
    %v564 = vpack.c.b16 %v370, %v368
    %v565 = vpack.c.b16 %v373, %v371
    %v566 = vpack.c.b16 %v374, %v372
    %v567 = vpack.c.b16 %v377, %v375
    %v568 = vpack.c.b16 %v378, %v376
    %v569 = vpack.c.b16 %v381, %v379
    %v570 = vpack.c.b16 %v382, %v380
    %v571 = vpack.c.b16 %v385, %v383
    %v572 = vpack.c.b16 %v386, %v384
    %v573 = vpack.c.b16 %v389, %v387
    %v574 = vpack.c.b16 %v390, %v388
    %v575 = vpack.c.b16 %v393, %v391
    %v576 = vpack.c.b16 %v394, %v392
    %v577 = vpack.c.b16 %v397, %v395
    %v578 = vpack.c.b16 %v398, %v396
    %v579 = vpack.c.b16 %v401, %v399
    %v580 = vpack.c.b16 %v402, %v400
    %v581 = vpack.c.b16 %v405, %v403
    %v582 = vpack.c.b16 %v406, %v404
    %v583 = vpack.c.b16 %v409, %v407
    %v584 = vpack.c.b16 %v410, %v408
    %v585 = vpack.c.b16 %v413, %v411
    %v586 = vpack.c.b16 %v414, %v412
    %v587 = vpack.c.b16 %v417, %v415
    %v588 = vpack.c.b16 %v418, %v416
    %v589 = vpack.c.b16 %v421, %v419
    %v590 = vpack.c.b16 %v422, %v420
    %v591 = vpack.c.b16 %v425, %v423
    %v592 = vpack.c.b16 %v426, %v424
    %v593 = vpack.c.b16 %v429, %v427
    %v594 = vpack.c.b16 %v430, %v428
    %v595 = vpack.c.b16 %v433, %v431
    %v596 = vpack.c.b16 %v434, %v432
    %v597 = vpack.c.b16 %v437, %v435
    %v598 = vpack.c.b16 %v438, %v436
    %v599 = vpack.c.b16 %v441, %v439
    %v600 = vpack.c.b16 %v442, %v440
    %v601 = vpack.c.b16 %v445, %v443
    %v602 = vpack.c.b16 %v446, %v444
    %v603 = vpack.c.b16 %v449, %v447
    %v604 = vpack.c.b16 %v450, %v448
    %v605 = vpack.c.b16 %v453, %v451
    %v606 = vpack.c.b16 %v454, %v452
    %v607 = vpack.c.b16 %v457, %v455
    %v608 = vpack.c.b16 %v458, %v456
    %v609 = vpack.c.b16 %v461, %v459
    %v610 = vpack.c.b16 %v462, %v460
    %v611 = vpack.c.b16 %v465, %v463
    %v612 = vpack.c.b16 %v466, %v464
    %v613 = vpack.c.b16 %v469, %v467
    %v614 = vpack.c.b16 %v470, %v468
    %v615 = vpack.c.b16 %v473, %v471
    %v616 = vpack.c.b16 %v474, %v472
    %v617 = vpack.c.b16 %v477, %v475
    %v618 = vpack.c.b16 %v478, %v476
    %v619 = vpack.c.b16 %v481, %v479
    %v620 = vpack.c.b16 %v482, %v480
    %v621 = vpack.c.b16 %v485, %v483
    %v622 = vpack.c.b16 %v486, %v484
    %v623 = vpack.c.b16 %v489, %v487
    %v624 = vpack.c.b16 %v490, %v488
    %v625 = vpack.c.b16 %v493, %v491
    %v626 = vpack.c.b16 %v494, %v492
    %v627 = vpack.c.b16 %v497, %v495
    %v628 = vpack.c.b16 %v498, %v496
    %v629 = vpack.c.b16 %v501, %v499
    %v630 = vpack.c.b16 %v502, %v500
    %v631 = vpack.c.b16 %v505, %v503
    %v632 = vpack.c.b16 %v506, %v504
    %v633 = vpack.c.b16 %v509, %v507
    %v634 = vpack.c.b16 %v510, %v508
    %v635 = vpack.c.b16 %v513, %v511
    %v636 = vpack.c.b16 %v514, %v512
    %v637 = vpack.c.b16 %v517, %v515
    %v638 = vpack.c.b16 %v518, %v516
    %v639 = vpack.c.b16 %v521, %v519
    %v640 = vpack.c.b16 %v522, %v520
    %v641 = vpack.c.b16 %v525, %v523
    %v642 = vpack.c.b16 %v526, %v524
    %v643 = vpack.c.b16 %v529, %v527
    %v644 = vpack.c.b16 %v530, %v528
    %v645 = vpack.c.b16 %v533, %v531
    %v646 = vpack.c.b16 %v534, %v532
    %759 = vmatpush.bf16.msra.mxu0 %v549
    %760 = vmatpush.bf16.msra.mxu0 %v547
    %761 = vmatpush.bf16.msra.mxu0 %v545
    %762 = vmatpush.bf16.msra.mxu0 %v543
    %763 = vmatpush.bf16.msra.mxu0 %v541
    %764 = vmatpush.bf16.msra.mxu0 %v539
    %765 = vmatpush.bf16.msra.mxu0 %v537
    %766 = vmatpush.bf16.msra.mxu0 %v535
    %767 = vmatmul.bf16.gmra.mxu0 %v80
    %v768 = vpop.f32.mrf.mxu0
    %v769 = vadd.f32 0.0, %v768
    %v770 = vpop.f32.mrf.mxu0
    %v771 = vadd.f32 0.0, %v770
    %772 = vdwg.mxu0
    %773 = vmatpush.bf16.msra.mxu0 %v565
    %774 = vmatpush.bf16.msra.mxu0 %v563
    %775 = vmatpush.bf16.msra.mxu0 %v561
    %776 = vmatpush.bf16.msra.mxu0 %v559
    %777 = vmatpush.bf16.msra.mxu0 %v557
    %778 = vmatpush.bf16.msra.mxu0 %v555
    %779 = vmatpush.bf16.msra.mxu0 %v553
    %780 = vmatpush.bf16.msra.mxu0 %v551
    %781 = vmatmul.bf16.gmra.mxu0 %v81
    %v782 = vpop.f32.mrf.mxu0
    %v783 = vadd.f32 %v769, %v782
    %v784 = vpop.f32.mrf.mxu0
    %v785 = vadd.f32 %v771, %v784
    %786 = vdwg.mxu0
    %787 = vmatpush.bf16.msra.mxu0 %v581
    %788 = vmatpush.bf16.msra.mxu0 %v579
    %789 = vmatpush.bf16.msra.mxu0 %v577
    %790 = vmatpush.bf16.msra.mxu0 %v575
    %791 = vmatpush.bf16.msra.mxu0 %v573
    %792 = vmatpush.bf16.msra.mxu0 %v571
    %793 = vmatpush.bf16.msra.mxu0 %v569
    %794 = vmatpush.bf16.msra.mxu0 %v567
    %795 = vmatmul.bf16.gmra.mxu0 %v82
    %v796 = vpop.f32.mrf.mxu0
    %v797 = vadd.f32 %v783, %v796
    %v798 = vpop.f32.mrf.mxu0
    %v799 = vadd.f32 %v785, %v798
    %800 = vdwg.mxu0
    %801 = vmatpush.bf16.msra.mxu0 %v597
    %802 = vmatpush.bf16.msra.mxu0 %v595
    %803 = vmatpush.bf16.msra.mxu0 %v593
    %804 = vmatpush.bf16.msra.mxu0 %v591
    %805 = vmatpush.bf16.msra.mxu0 %v589
    %806 = vmatpush.bf16.msra.mxu0 %v587
    %807 = vmatpush.bf16.msra.mxu0 %v585
    %808 = vmatpush.bf16.msra.mxu0 %v583
    %809 = vmatmul.bf16.gmra.mxu0 %v83
    %v810 = vpop.f32.mrf.mxu0
    %v811 = vadd.f32 %v797, %v810
    %v812 = vpop.f32.mrf.mxu0
    %v813 = vadd.f32 %v799, %v812
    %814 = vdwg.mxu0
    %815 = vmatpush.bf16.msra.mxu0 %v613
    %816 = vmatpush.bf16.msra.mxu0 %v611
    %817 = vmatpush.bf16.msra.mxu0 %v609
    %818 = vmatpush.bf16.msra.mxu0 %v607
    %819 = vmatpush.bf16.msra.mxu0 %v605
    %820 = vmatpush.bf16.msra.mxu0 %v603
    %821 = vmatpush.bf16.msra.mxu0 %v601
    %822 = vmatpush.bf16.msra.mxu0 %v599
    %823 = vmatmul.bf16.gmra.mxu0 %v84
    %v824 = vpop.f32.mrf.mxu0
    %v825 = vadd.f32 %v811, %v824
    %v826 = vpop.f32.mrf.mxu0
    %v827 = vadd.f32 %v813, %v826
    %828 = vdwg.mxu0
    %829 = vmatpush.bf16.msra.mxu0 %v629
    %830 = vmatpush.bf16.msra.mxu0 %v627
    %831 = vmatpush.bf16.msra.mxu0 %v625
    %832 = vmatpush.bf16.msra.mxu0 %v623
    %833 = vmatpush.bf16.msra.mxu0 %v621
    %834 = vmatpush.bf16.msra.mxu0 %v619
    %835 = vmatpush.bf16.msra.mxu0 %v617
    %836 = vmatpush.bf16.msra.mxu0 %v615
    %837 = vmatmul.bf16.gmra.mxu0 %v85
    %v838 = vpop.f32.mrf.mxu0
    %v839 = vadd.f32 %v825, %v838
    %v840 = vpop.f32.mrf.mxu0
    %v841 = vadd.f32 %v827, %v840
    %842 = vdwg.mxu0
    %843 = vmatpush.bf16.msra.mxu0 %v645
    %844 = vmatpush.bf16.msra.mxu0 %v643
    %845 = vmatpush.bf16.msra.mxu0 %v641
    %846 = vmatpush.bf16.msra.mxu0 %v639
    %847 = vmatpush.bf16.msra.mxu0 %v637
    %848 = vmatpush.bf16.msra.mxu0 %v635
    %849 = vmatpush.bf16.msra.mxu0 %v633
    %850 = vmatpush.bf16.msra.mxu0 %v631
    %851 = vmatmul.bf16.gmra.mxu0 %v86
    %v852 = vpop.f32.mrf.mxu0
    %v853 = vadd.f32 %v839, %v852
    %v854 = vpop.f32.mrf.mxu0
    %v855 = vadd.f32 %v841, %v854
    %856 = vdwg.mxu0
    %857 = vmatpush.bf16.msra.mxu0 %v550
    %858 = vmatpush.bf16.msra.mxu0 %v548
    %859 = vmatpush.bf16.msra.mxu0 %v546
    %860 = vmatpush.bf16.msra.mxu0 %v544
    %861 = vmatpush.bf16.msra.mxu0 %v542
    %862 = vmatpush.bf16.msra.mxu0 %v540
    %863 = vmatpush.bf16.msra.mxu0 %v538
    %864 = vmatpush.bf16.msra.mxu0 %v536
    %865 = vmatmul.bf16.gmra.mxu0 %v80
    %v866 = vpop.f32.mrf.mxu0
    %v867 = vadd.f32 0.0, %v866
    %v868 = vpop.f32.mrf.mxu0
    %v869 = vadd.f32 0.0, %v868
    %870 = vdwg.mxu0
    %871 = vmatpush.bf16.msra.mxu0 %v566
    %872 = vmatpush.bf16.msra.mxu0 %v564
    %873 = vmatpush.bf16.msra.mxu0 %v562
    %874 = vmatpush.bf16.msra.mxu0 %v560
    %875 = vmatpush.bf16.msra.mxu0 %v558
    %876 = vmatpush.bf16.msra.mxu0 %v556
    %877 = vmatpush.bf16.msra.mxu0 %v554
    %878 = vmatpush.bf16.msra.mxu0 %v552
    %879 = vmatmul.bf16.gmra.mxu0 %v81
    %v880 = vpop.f32.mrf.mxu0
    %v881 = vadd.f32 %v867, %v880
    %v882 = vpop.f32.mrf.mxu0
    %v883 = vadd.f32 %v869, %v882
    %884 = vdwg.mxu0
    %885 = vmatpush.bf16.msra.mxu0 %v582
    %886 = vmatpush.bf16.msra.mxu0 %v580
    %887 = vmatpush.bf16.msra.mxu0 %v578
    %888 = vmatpush.bf16.msra.mxu0 %v576
    %889 = vmatpush.bf16.msra.mxu0 %v574
    %890 = vmatpush.bf16.msra.mxu0 %v572
    %891 = vmatpush.bf16.msra.mxu0 %v570
    %892 = vmatpush.bf16.msra.mxu0 %v568
    %893 = vmatmul.bf16.gmra.mxu0 %v82
    %v894 = vpop.f32.mrf.mxu0
    %v895 = vadd.f32 %v881, %v894
    %v896 = vpop.f32.mrf.mxu0
    %v897 = vadd.f32 %v883, %v896
    %898 = vdwg.mxu0
    %899 = vmatpush.bf16.msra.mxu0 %v598
    %900 = vmatpush.bf16.msra.mxu0 %v596
    %901 = vmatpush.bf16.msra.mxu0 %v594
    %902 = vmatpush.bf16.msra.mxu0 %v592
    %903 = vmatpush.bf16.msra.mxu0 %v590
    %904 = vmatpush.bf16.msra.mxu0 %v588
    %905 = vmatpush.bf16.msra.mxu0 %v586
    %906 = vmatpush.bf16.msra.mxu0 %v584
    %907 = vmatmul.bf16.gmra.mxu0 %v83
    %v908 = vpop.f32.mrf.mxu0
    %v909 = vadd.f32 %v895, %v908
    %v910 = vpop.f32.mrf.mxu0
    %v911 = vadd.f32 %v897, %v910
    %912 = vdwg.mxu0
    %913 = vmatpush.bf16.msra.mxu0 %v614
    %914 = vmatpush.bf16.msra.mxu0 %v612
    %915 = vmatpush.bf16.msra.mxu0 %v610
    %916 = vmatpush.bf16.msra.mxu0 %v608
    %917 = vmatpush.bf16.msra.mxu0 %v606
    %918 = vmatpush.bf16.msra.mxu0 %v604
    %919 = vmatpush.bf16.msra.mxu0 %v602
    %920 = vmatpush.bf16.msra.mxu0 %v600
    %921 = vmatmul.bf16.gmra.mxu0 %v84
    %v922 = vpop.f32.mrf.mxu0
    %v923 = vadd.f32 %v909, %v922
    %v924 = vpop.f32.mrf.mxu0
    %v925 = vadd.f32 %v911, %v924
    %926 = vdwg.mxu0
    %927 = vmatpush.bf16.msra.mxu0 %v630
    %928 = vmatpush.bf16.msra.mxu0 %v628
    %929 = vmatpush.bf16.msra.mxu0 %v626
    %930 = vmatpush.bf16.msra.mxu0 %v624
    %931 = vmatpush.bf16.msra.mxu0 %v622
    %932 = vmatpush.bf16.msra.mxu0 %v620
    %933 = vmatpush.bf16.msra.mxu0 %v618
    %934 = vmatpush.bf16.msra.mxu0 %v616
    %935 = vmatmul.bf16.gmra.mxu0 %v85
    %v936 = vpop.f32.mrf.mxu0
    %v937 = vadd.f32 %v923, %v936
    %v938 = vpop.f32.mrf.mxu0
    %v939 = vadd.f32 %v925, %v938
    %940 = vdwg.mxu0
    %941 = vmatpush.bf16.msra.mxu0 %v646
    %942 = vmatpush.bf16.msra.mxu0 %v644
    %943 = vmatpush.bf16.msra.mxu0 %v642
    %944 = vmatpush.bf16.msra.mxu0 %v640
    %945 = vmatpush.bf16.msra.mxu0 %v638
    %946 = vmatpush.bf16.msra.mxu0 %v636
    %947 = vmatpush.bf16.msra.mxu0 %v634
    %948 = vmatpush.bf16.msra.mxu0 %v632
    %949 = vmatmul.bf16.gmra.mxu0 %v86
    %v950 = vpop.f32.mrf.mxu0
    %v951 = vadd.f32 %v937, %v950
    %v952 = vpop.f32.mrf.mxu0
    %v953 = vadd.f32 %v939, %v952
    %954 = vdwg.mxu0
    %v955 = vadd.f32 %v62, %v853
    %v956 = vadd.f32 %v63, %v951
    %v957 = vadd.f32 %v64, %v855
    %v958 = vadd.f32 %v65, %v953
    %959 = vst [vmem:[#allocation2] sm:$0xff] %v955
    %960 = vst [vmem:[#allocation2 + $0x8] sm:$0xff] %v956
    %961 = vst [vmem:[#allocation2 + $0x10] sm:$0xff] %v957
    %962 = vst [vmem:[#allocation2 + $0x18] sm:$0xff] %v958
    // Predicated region
    $region46: #{forward.1} parent=1 // pred_check
      %p963 = pneg %p48
    $region47: #{forward.1} parent=1 // pred_check_branch
      %965 = sbr.rel (%p963) target = $region49
    $region48: #{forward.1} parent=1 // pred_region
      %v966 = vld [vmem:[#allocation2] sm:$0xff]
      %v967 = vld [vmem:[#allocation2 + $0x8] sm:$0xff]
      %v968 = vld [vmem:[#allocation2 + $0x10] sm:$0xff]
      %v969 = vld [vmem:[#allocation2 + $0x18] sm:$0xff]
      %vm970 = vcmp.gt.f32.partialorder %v966, 20.0
      %vm971 = vcmp.gt.f32.partialorder %v967, 20.0
      %vm972 = vcmp.gt.f32.partialorder %v968, 20.0
      %vm973 = vcmp.gt.f32.partialorder %v969, 20.0
      %v974 = vmin.f32 %v966, 20.0
      %v975 = vmin.f32 %v967, 20.0
      %v976 = vmin.f32 %v968, 20.0
      %v977 = vmin.f32 %v969, 20.0
      %v978 = vmul.f32 %v974, 1.442695
      %v979 = vpow.pop %v978
      %v980 = vmul.f32 %v975, 1.442695
      %v981 = vpow.pop %v980
      %v982 = vmul.f32 %v976, 1.442695
      %v983 = vpow.pop %v982
      %v984 = vmul.f32 %v977, 1.442695
      %v985 = vpow.pop %v984
      %v986 = vadd.f32 %v979, 1.0
      %v987 = vlog2.pop %v986
      %v988 = vmul.f32 %v987, 0.6931472
      %v989 = vmul.f32 -0.5, %v979
      %v990 = vadd.f32 %v989, 1.0
      %v991 = vmul.f32 %v990, %v979
      %v992 = vand.u32 2147483647, %v979
      %vm993 = vcmp.lt.f32.partialorder %v992, 0.0004427343
      %v994 = vsel %vm993, %v991, %v988
      %v995 = vadd.f32 %v981, 1.0
      %v996 = vlog2.pop %v995
      %v997 = vmul.f32 %v996, 0.6931472
      %v998 = vmul.f32 -0.5, %v981
      %v999 = vadd.f32 %v998, 1.0
      %v1000 = vmul.f32 %v999, %v981
      %v1001 = vand.u32 2147483647, %v981
      %vm1002 = vcmp.lt.f32.partialorder %v1001, 0.0004427343
      %v1003 = vsel %vm1002, %v1000, %v997
      %v1004 = vadd.f32 %v983, 1.0
      %v1005 = vlog2.pop %v1004
      %v1006 = vmul.f32 %v1005, 0.6931472
      %v1007 = vmul.f32 -0.5, %v983
      %v1008 = vadd.f32 %v1007, 1.0
      %v1009 = vmul.f32 %v1008, %v983
      %v1010 = vand.u32 2147483647, %v983
      %vm1011 = vcmp.lt.f32.partialorder %v1010, 0.0004427343
      %v1012 = vsel %vm1011, %v1009, %v1006
      %v1013 = vadd.f32 %v985, 1.0
      %v1014 = vlog2.pop %v1013
      %v1015 = vmul.f32 %v1014, 0.6931472
      %v1016 = vmul.f32 -0.5, %v985
      %v1017 = vadd.f32 %v1016, 1.0
      %v1018 = vmul.f32 %v1017, %v985
      %v1019 = vand.u32 2147483647, %v985
      %vm1020 = vcmp.lt.f32.partialorder %v1019, 0.0004427343
      %v1021 = vsel %vm1020, %v1018, %v1015
      %v1022 = vsel %vm970, %v966, %v994
      %v1023 = vsel %vm971, %v967, %v1003
      %v1024 = vsel %vm972, %v968, %v1012
      %v1025 = vsel %vm973, %v969, %v1021
      %v1026 = vld [vmem:[%s3] sm:$0xff]
      %v1027 = vld [vmem:[%s3 + $0x8] sm:$0xff]
      %v1028 = vld [vmem:[%s3 + $0x10] sm:$0xff]
      %v1029 = vld [vmem:[%s3 + $0x18] sm:$0xff]
      %v1030 = vld [vmem:[%s3 + $0x20] sm:$0xff]
      %v1031 = vld [vmem:[%s3 + $0x28] sm:$0xff]
      %v1032 = vld [vmem:[%s3 + $0x30] sm:$0xff]
      %v1033 = vld [vmem:[%s3 + $0x38] sm:$0xff]
      %v1034 = vld [vmem:[%s3 + $0x40] sm:$0xff]
      %v1035 = vld [vmem:[%s3 + $0x48] sm:$0xff]
      %v1036 = vld [vmem:[%s3 + $0x50] sm:$0xff]
      %v1037 = vld [vmem:[%s3 + $0x58] sm:$0xff]
      %v1038 = vld [vmem:[%s3 + $0x60] sm:$0xff]
      %v1039 = vld [vmem:[%s3 + $0x68] sm:$0xff]
      %v1040 = vld [vmem:[%s3 + $0x70] sm:$0xff]
      %v1041 = vld [vmem:[%s3 + $0x78] sm:$0xff]
      %v1042 = vld [vmem:[%s3 + $0x80] sm:$0xff]
      %v1043 = vld [vmem:[%s3 + $0x88] sm:$0xff]
      %v1044 = vld [vmem:[%s3 + $0x90] sm:$0xff]
      %v1045 = vld [vmem:[%s3 + $0x98] sm:$0xff]
      %v1046 = vld [vmem:[%s3 + $0xa0] sm:$0xff]
      %v1047 = vld [vmem:[%s3 + $0xa8] sm:$0xff]
      %v1048 = vld [vmem:[%s3 + $0xb0] sm:$0xff]
      %v1049 = vld [vmem:[%s3 + $0xb8] sm:$0xff]
      %v1050 = vld [vmem:[%s3 + $0xc0] sm:$0xff]
      %v1051 = vld [vmem:[%s3 + $0xc8] sm:$0xff]
      %v1052 = vld [vmem:[%s3 + $0xd0] sm:$0xff]
      %v1053 = vld [vmem:[%s3 + $0xd8] sm:$0xff]
      %v1054 = vld [vmem:[%s3 + $0xe0] sm:$0xff]
      %v1055 = vld [vmem:[%s3 + $0xe8] sm:$0xff]
      %v1056 = vld [vmem:[%s3 + $0xf0] sm:$0xff]
      %v1057 = vld [vmem:[%s3 + $0xf8] sm:$0xff]
      %v1058 = vld [vmem:[%s4] sm:$0x1]
      %v1060 = vperm.slane %v1058, 0
      %1062 = vmatpush.msra.mxu0 %v1041
      %1063 = vmatpush.msra.mxu0 %v1040
      %1064 = vmatpush.msra.mxu0 %v1039
      %1065 = vmatpush.msra.mxu0 %v1038
      %1066 = vmatpush.msra.mxu0 %v1037
      %1067 = vmatpush.msra.mxu0 %v1036
      %1068 = vmatpush.msra.mxu0 %v1035
      %1069 = vmatpush.msra.mxu0 %v1034
      %1070 = vmatpush.msra.mxu0 %v1033
      %1071 = vmatpush.msra.mxu0 %v1032
      %1072 = vmatpush.msra.mxu0 %v1031
      %1073 = vmatpush.msra.mxu0 %v1030
      %1074 = vmatpush.msra.mxu0 %v1029
      %1075 = vmatpush.msra.mxu0 %v1028
      %1076 = vmatpush.msra.mxu0 %v1027
      %1077 = vmatpush.msra.mxu0 %v1026
      %1078 = vmatmul.f32.gmra.mxu0 %v1022
      %v1079 = vpop.f32.mrf.mxu0
      %v1080 = vadd.f32 %v1060, %v1079
      %1081 = vmatmul.f32.gmra.mxu0 %v1024
      %v1082 = vpop.f32.mrf.mxu0
      %v1083 = vadd.f32 %v1060, %v1082
      %1084 = vdwg.mxu0
      %1085 = vmatpush.msra.mxu0 %v1057
      %1086 = vmatpush.msra.mxu0 %v1056
      %1087 = vmatpush.msra.mxu0 %v1055
      %1088 = vmatpush.msra.mxu0 %v1054
      %1089 = vmatpush.msra.mxu0 %v1053
      %1090 = vmatpush.msra.mxu0 %v1052
      %1091 = vmatpush.msra.mxu0 %v1051
      %1092 = vmatpush.msra.mxu0 %v1050
      %1093 = vmatpush.msra.mxu0 %v1049
      %1094 = vmatpush.msra.mxu0 %v1048
      %1095 = vmatpush.msra.mxu0 %v1047
      %1096 = vmatpush.msra.mxu0 %v1046
      %1097 = vmatpush.msra.mxu0 %v1045
      %1098 = vmatpush.msra.mxu0 %v1044
      %1099 = vmatpush.msra.mxu0 %v1043
      %1100 = vmatpush.msra.mxu0 %v1042
      %1101 = vmatmul.f32.gmra.mxu0 %v1023
      %v1102 = vpop.f32.mrf.mxu0
      %v1103 = vadd.f32 %v1080, %v1102
      %1104 = vmatmul.f32.gmra.mxu0 %v1025
      %v1105 = vpop.f32.mrf.mxu0
      %v1106 = vadd.f32 %v1083, %v1105
      %1107 = vdwg.mxu0
      %vm1108 = vcmp.gt.f32.partialorder %v1103, 20.0
      %vm1109 = vcmp.gt.f32.partialorder %v1106, 20.0
      %v1110 = vmin.f32 %v1103, 20.0
      %v1111 = vmin.f32 %v1106, 20.0
      %v1112 = vmul.f32 %v1110, 1.442695
      %v1113 = vpow.pop %v1112
      %v1114 = vmul.f32 %v1111, 1.442695
      %v1115 = vpow.pop %v1114
      %v1116 = vadd.f32 %v1113, 1.0
      %v1117 = vlog2.pop %v1116
      %v1118 = vmul.f32 %v1117, 0.6931472
      %v1119 = vmul.f32 -0.5, %v1113
      %v1120 = vadd.f32 %v1119, 1.0
      %v1121 = vmul.f32 %v1120, %v1113
      %v1122 = vand.u32 2147483647, %v1113
      %vm1123 = vcmp.lt.f32.partialorder %v1122, 0.0004427343
      %v1124 = vsel %vm1123, %v1121, %v1118
      %v1125 = vadd.f32 %v1115, 1.0
      %v1126 = vlog2.pop %v1125
      %v1127 = vmul.f32 %v1126, 0.6931472
      %v1128 = vmul.f32 -0.5, %v1115
      %v1129 = vadd.f32 %v1128, 1.0
      %v1130 = vmul.f32 %v1129, %v1115
      %v1131 = vand.u32 2147483647, %v1115
      %vm1132 = vcmp.lt.f32.partialorder %v1131, 0.0004427343
      %v1133 = vsel %vm1132, %v1130, %v1127
      %v1134 = vsel %vm1108, %v1103, %v1124
      %v1135 = vsel %vm1109, %v1106, %v1133
      %v1136 = vld [vmem:[%s5] sm:$0xff]
      %v1137 = vld [vmem:[%s5 + $0x8] sm:$0xff]
      %v1138 = vld [vmem:[%s5 + $0x10] sm:$0xff]
      %v1139 = vld [vmem:[%s5 + $0x18] sm:$0xff]
      %v1140 = vld [vmem:[%s5 + $0x20] sm:$0xff]
      %v1141 = vld [vmem:[%s5 + $0x28] sm:$0xff]
      %v1142 = vld [vmem:[%s5 + $0x30] sm:$0xff]
      %v1143 = vld [vmem:[%s5 + $0x38] sm:$0xff]
      %v1144 = vld [vmem:[%s5 + $0x40] sm:$0xff]
      %v1145 = vld [vmem:[%s5 + $0x48] sm:$0xff]
      %v1146 = vld [vmem:[%s5 + $0x50] sm:$0xff]
      %v1147 = vld [vmem:[%s5 + $0x58] sm:$0xff]
      %v1148 = vld [vmem:[%s5 + $0x60] sm:$0xff]
      %v1149 = vld [vmem:[%s5 + $0x68] sm:$0xff]
      %v1150 = vld [vmem:[%s5 + $0x70] sm:$0xff]
      %v1151 = vld [vmem:[%s5 + $0x78] sm:$0xff]
      %v1152 = vld [vmem:[%s6] sm:$0x1]
      %v1154 = vperm.slane %v1152, 0
      %1156 = vmatpush.msra.mxu0 %v1151
      %1157 = vmatpush.msra.mxu0 %v1150
      %1158 = vmatpush.msra.mxu0 %v1149
      %1159 = vmatpush.msra.mxu0 %v1148
      %1160 = vmatpush.msra.mxu0 %v1147
      %1161 = vmatpush.msra.mxu0 %v1146
      %1162 = vmatpush.msra.mxu0 %v1145
      %1163 = vmatpush.msra.mxu0 %v1144
      %1164 = vmatpush.msra.mxu0 %v1143
      %1165 = vmatpush.msra.mxu0 %v1142
      %1166 = vmatpush.msra.mxu0 %v1141
      %1167 = vmatpush.msra.mxu0 %v1140
      %1168 = vmatpush.msra.mxu0 %v1139
      %1169 = vmatpush.msra.mxu0 %v1138
      %1170 = vmatpush.msra.mxu0 %v1137
      %1171 = vmatpush.msra.mxu0 %v1136
      %1172 = vmatmul.f32.gmra.mxu0 %v1134
      %v1173 = vpop.f32.mrf.mxu0
      %v1174 = vadd.f32 %v1154, %v1173
      %1175 = vmatmul.f32.gmra.mxu0 %v1135
      %v1176 = vpop.f32.mrf.mxu0
      %v1177 = vadd.f32 %v1154, %v1176
      %1178 = vdwg.mxu0
      %vm1179 = vcmp.gt.f32.partialorder %v1174, 20.0
      %vm1180 = vcmp.gt.f32.partialorder %v1177, 20.0
      %v1181 = vmin.f32 %v1174, 20.0
      %v1182 = vmin.f32 %v1177, 20.0
      %v1183 = vmul.f32 %v1181, 1.442695
      %v1184 = vpow.pop %v1183
      %v1185 = vmul.f32 %v1182, 1.442695
      %v1186 = vpow.pop %v1185
      %v1187 = vadd.f32 %v1184, 1.0
      %v1188 = vlog2.pop %v1187
      %v1189 = vmul.f32 %v1188, 0.6931472
      %v1190 = vmul.f32 -0.5, %v1184
      %v1191 = vadd.f32 %v1190, 1.0
      %v1192 = vmul.f32 %v1191, %v1184
      %v1193 = vand.u32 2147483647, %v1184
      %vm1194 = vcmp.lt.f32.partialorder %v1193, 0.0004427343
      %v1195 = vsel %vm1194, %v1192, %v1189
      %v1196 = vadd.f32 %v1186, 1.0
      %v1197 = vlog2.pop %v1196
      %v1198 = vmul.f32 %v1197, 0.6931472
      %v1199 = vmul.f32 -0.5, %v1186
      %v1200 = vadd.f32 %v1199, 1.0
      %v1201 = vmul.f32 %v1200, %v1186
      %v1202 = vand.u32 2147483647, %v1186
      %vm1203 = vcmp.lt.f32.partialorder %v1202, 0.0004427343
      %v1204 = vsel %vm1203, %v1201, %v1198
      %v1205 = vsel %vm1179, %v1174, %v1195
      %v1206 = vsel %vm1180, %v1177, %v1204
      %v1207 = vld [vmem:[%s7] sm:$0xff]
      %v1208 = vld [vmem:[%s7 + $0x8] sm:$0xff]
      %v1209 = vld [vmem:[%s7 + $0x10] sm:$0xff]
      %v1210 = vld [vmem:[%s7 + $0x18] sm:$0xff]
      %v1211 = vld [vmem:[%s7 + $0x20] sm:$0xff]
      %v1212 = vld [vmem:[%s7 + $0x28] sm:$0xff]
      %v1213 = vld [vmem:[%s7 + $0x30] sm:$0xff]
      %v1214 = vld [vmem:[%s7 + $0x38] sm:$0xff]
      %v1215 = vld [vmem:[%s8] sm:$0x1]
      %v1217 = vperm.slane %v1215, 0
      %vm1219 = vcmask 523264
      %v1221 = vsel %vm1219, %v1205, 0
      %v1224 = vsel %vm1219, %v1206, 0
      %1226 = vmatpush.msra.mxu0 0.0
      %1227 = vmatpush.msra.mxu0 0.0
      %1228 = vmatpush.msra.mxu0 0.0
      %1229 = vmatpush.msra.mxu0 0.0
      %1230 = vmatpush.msra.mxu0 0.0
      %1231 = vmatpush.msra.mxu0 0.0
      %1232 = vmatpush.msra.mxu0 0.0
      %1233 = vmatpush.msra.mxu0 0.0
      %1234 = vmatpush.msra.mxu0 %v1214
      %1235 = vmatpush.msra.mxu0 %v1213
      %1236 = vmatpush.msra.mxu0 %v1212
      %1237 = vmatpush.msra.mxu0 %v1211
      %1238 = vmatpush.msra.mxu0 %v1210
      %1239 = vmatpush.msra.mxu0 %v1209
      %1240 = vmatpush.msra.mxu0 %v1208
      %1241 = vmatpush.msra.mxu0 %v1207
      %1242 = vmatmul.f32.gmra.mxu0 %v1221
      %v1243 = vpop.f32.mrf.mxu0
      %v1244 = vadd.f32 %v1217, %v1243
      %1245 = vmatmul.f32.gmra.mxu0 %v1224
      %v1246 = vpop.f32.mrf.mxu0
      %v1247 = vadd.f32 %v1217, %v1246
      %1248 = vdwg.mxu0
      %1249 = vmax.xlane.f32.xlu0 %v1244
      %v1250 = vpop.xlane.xlu0 %1249
      %1251 = vmax.xlane.f32.xlu0 %v1247
      %v1252 = vpop.xlane.xlu0 %1251
      %v1253 = vsub.f32 %v1244, %v1250
      %v1254 = vsub.f32 %v1247, %v1252
      %v1255 = vmul.f32 %v1253, 1.442695
      %v1256 = vpow.pop %v1255
      %v1257 = vmul.f32 %v1254, 1.442695
      %v1258 = vpow.pop %v1257
      %1259 = vadd.xlane.f32.xlu0 %v1256
      %v1260 = vpop.xlane.xlu0 %1259
      %1261 = vadd.xlane.f32.xlu0 %v1258
      %v1262 = vpop.xlane.xlu0 %1261
      %v1263 = vlog2.pop %v1260
      %v1264 = vmul.f32 %v1263, 0.6931472
      %v1265 = vlog2.pop %v1262
      %v1266 = vmul.f32 %v1265, 0.6931472
      %v1267 = vadd.f32 %v1264, %v1250
      %v1268 = vadd.f32 %v1266, %v1252
      %v1269 = vsub.f32 %v1244, %v1267
      %v1270 = vsub.f32 %v1247, %v1268
      %1271 = vst [vmem:[%s9] sm:$0xff] %v1269
      %1272 = vst [vmem:[%s9 + $0x8] sm:$0xff] %v1270
    $region49: #{forward.1} parent=1 // pred_fallthru
      _
    // Predicated region
    $region50: #{forward.1} parent=1 // pred_check
      _
    $region51: #{forward.1} parent=1 // pred_check_branch
      %1274 = sbr.rel (0) target = $region53
    $region52: #{forward.1} parent=1 // pred_region
      _
    $region53: #{forward.1} parent=1 // pred_fallthru
      _
    // Predicated region
    $region54: #{forward.1} parent=1 // pred_check
      _
    $region55: #{forward.1} parent=1 // pred_check_branch
      %1276 = sbr.rel (0) target = $region57
    $region56: #{forward.1} parent=1 // pred_region
      _
    $region57: #{forward.1} parent=1 // pred_fallthru
      _
    %1277 = vsyncpa [#allocation4], 1

</llo_original>
